<compile_context>
chip_gen: v7x
topology: tpu7x:2x2x1
jax: 0.10.0
libtpu: 0.0.40
codegen_flags: <defaults>
</compile_context>

<pallas_src>
import functools

import jax
import jax.numpy as jnp
from jax.experimental import pallas as pl
from jax.experimental.pallas import tpu as pltpu

_LANE = 128


# --------------------------------------------------------------------------
# small helpers
# --------------------------------------------------------------------------
def _spatial_sum_f32(v):
    """Sum over the two minor (sublane, lane) dims with f32 accumulation."""
    s = jnp.sum(v, axis=-1, keepdims=True, dtype=jnp.float32)
    return jnp.sum(s, axis=-2, keepdims=True)


def _for_channels(cg, body, init, *, unroll):
    """Loop body(ci, carry) -> carry over channels: static unroll for small
    cg, lax.fori_loop for wide channels (bounds vreg live ranges)."""
    if unroll:
        carry = init
        for ci in range(cg):
            carry = body(ci, carry)
        return carry
    return jax.lax.fori_loop(0, cg, body, init)


def _vmem_capacity_bytes():
    try:
        return int(pltpu.get_tpu_info().vmem_capacity_bytes)
    except Exception:
        # Query unavailable: assume the tightest part (v7x, 64 MiB per TC).
        return 64 << 20


def _vmem_limit_bytes(phys_vmem, block_bytes):
    # Double-buffered input + output blocks plus headroom for the f32
    # temporaries (xn / gate) the compiler materializes inside the kernel.
    want = 4 * block_bytes + (16 << 20)
    want = max(want, 32 << 20)
    return int(min(want, (phys_vmem * 3) // 4))


def _pick_fold(bg, slab_bytes, budget_bytes, num_cores):
    """Largest (b*g)-slab fold whose block fits the budget, preferring folds
    that balance the grid across `num_cores` TensorCores."""
    fits = [d for d in range(1, bg + 1)
            if bg % d == 0 and d * slab_bytes <= budget_bytes]
    if not fits:
        return 1

    def makespan(d):
        steps = bg // d
        return -(-steps // num_cores) * d   # slabs processed by busiest core

    return min(fits, key=lambda d: (makespan(d), -d))


# --------------------------------------------------------------------------
# fused kernel: whole (cg, hw) slab(s) resident per grid step
# --------------------------------------------------------------------------
def _sge_fused_kernel(wb_ref, x_ref, o_ref, *, hw, unroll_channels):
    # wb_ref : (G, 1, 1, 2) f32  per-(b, g) (weight, bias)
    # x_ref  : (G, cg, hs, 128) input block, G folded (b, g) slabs
    # o_ref  : (G, cg, hs, 128) output block
    G, cg, hs, L = x_ref.shape
    inv_hw = jnp.float32(1.0 / hw)

    # ---- pass 1: per-channel spatial mean, accumulate channel-weighted map.
    #      Native-dtype loads, f32 accumulation (no standalone upcast pass).
    def p1(ci, xn):
        xc = x_ref[:, pl.ds(ci, 1)]                        # (G,1,hs,L) native
        m_c = _spatial_sum_f32(xc) * inv_hw                # (G,1,1,1) f32
        return xn + xc * m_c                               # promotes to f32

    xn = _for_channels(cg, p1, jnp.zeros((G, 1, hs, L), jnp.float32),
                       unroll=unroll_channels)

    # ---- normalize xn over spatial positions (unbiased std, eps on std).
    t_mean = _spatial_sum_f32(xn) * inv_hw                 # (G,1,1,1)
    tc = xn - t_mean
    if hw != hs * L:
        # Spatial axis was zero-padded to a multiple of 128: keep the padded
        # tail out of the variance (padded outputs are x==0 and sliced off).
        flat = (jax.lax.broadcasted_iota(jnp.int32, (1, 1, hs, L), 2) * L
                + jax.lax.broadcasted_iota(jnp.int32, (1, 1, hs, L), 3))
        tc_v = jnp.where(flat < hw, tc, 0.0)
    else:
        tc_v = tc
    var = _spatial_sum_f32(tc_v * tc_v) * jnp.float32(1.0 / max(hw - 1, 1))
    std = jnp.sqrt(var) + jnp.float32(1e-5)
    inv_std = pl.reciprocal(std, approx=False)             # tiny, exact

    wb = wb_ref[...]                                       # (G,1,1,2)
    gamma = wb[:, :, :, 0:1]
    beta = wb[:, :, :, 1:2]
    gate = jax.nn.sigmoid(tc * (inv_std * gamma) + beta).astype(o_ref.dtype)

    # ---- pass 2: apply the gate to every channel of the group.
    def p2(ci, carry):
        o_ref[:, pl.ds(ci, 1)] = x_ref[:, pl.ds(ci, 1)] * gate
        return carry

    _for_channels(cg, p2, 0, unroll=unroll_channels)


# --------------------------------------------------------------------------
# hw-split kernel: 3 phases over spatial blocks, stats in VMEM scratch
# --------------------------------------------------------------------------
def _sge_split_kernel(wb_ref, x_ref, o_ref, ch_sum_ref, s1_ref, s2_ref, *,
                      hw, unroll_channels):
    # phase 0: accumulate per-channel spatial sums (-> channel means)
    # phase 1: accumulate sum(xn) and sum(xn^2) over spatial blocks
    # phase 2: finalize stats, compute gate, apply to every channel
    # wb_ref : (1,1,1,2) f32 ; x_ref/o_ref : (1, cg, hs_blk, 128)
    # ch_sum_ref : VMEM (1,cg,1,1) f32 ; s1_ref/s2_ref : VMEM (1,1,1,1) f32
    phase = pl.program_id(1)
    k = pl.program_id(2)
    _, cg, hs_blk, L = x_ref.shape
    inv_hw = jnp.float32(1.0 / hw)

    def channel_weighted_sum():
        # xn = sum_c x_c * mean_c for this spatial block, f32 accumulation.
        def body(ci, xn):
            xc = x_ref[:, pl.ds(ci, 1)]                    # (1,1,hs_blk,L)
            m_c = ch_sum_ref[:, pl.ds(ci, 1)] * inv_hw     # (1,1,1,1)
            return xn + xc * m_c
        return _for_channels(cg, body,
                             jnp.zeros((1, 1, hs_blk, L), jnp.float32),
                             unroll=unroll_channels)

    @pl.when(phase == 0)
    def _():
        sums = _spatial_sum_f32(x_ref[...])                # (1,cg,1,1)

        @pl.when(k == 0)
        def _():
            ch_sum_ref[...] = sums

        @pl.when(k > 0)
        def _():
            ch_sum_ref[...] += sums

    @pl.when(phase == 1)
    def _():
        xn = channel_weighted_sum()
        s1 = _spatial_sum_f32(xn)
        s2 = _spatial_sum_f32(xn * xn)

        @pl.when(k == 0)
        def _():
            s1_ref[...] = s1
            s2_ref[...] = s2

        @pl.when(k > 0)
        def _():
            s1_ref[...] += s1
            s2_ref[...] += s2

    @pl.when(phase == 2)
    def _():
        t_mean = s1_ref[...] * inv_hw                      # (1,1,1,1)
        # sum((xn-mean)^2) == sum(xn^2) - hw*mean^2 (zero-padded tail adds 0).
        var = (s2_ref[...] - t_mean * s1_ref[...]) * \
            jnp.float32(1.0 / max(hw - 1, 1))
        var = jnp.maximum(var, 0.0)
        std = jnp.sqrt(var) + jnp.float32(1e-5)
        wb = wb_ref[...]                                   # (1,1,1,2)
        gain = wb[:, :, :, 0:1] * pl.reciprocal(std, approx=False)
        beta = wb[:, :, :, 1:2]
        xn = channel_weighted_sum()
        gate = jax.nn.sigmoid((xn - t_mean) * gain + beta).astype(o_ref.dtype)

        def apply(ci, carry):
            o_ref[:, pl.ds(ci, 1)] = x_ref[:, pl.ds(ci, 1)] * gate
            return carry

        _for_channels(cg, apply, 0, unroll=unroll_channels)


# --------------------------------------------------------------------------
# wrapper
# --------------------------------------------------------------------------
def spatial_group_enhance(x, weight, bias, groups, *, block_budget_bytes=None):
    """x: (b, c, h, w) NCHW; weight/bias: (1, groups, 1, 1)."""
    b, c, h, w = x.shape
    assert c % groups == 0
    cg = c // groups
    bg = b * groups
    hw = h * w
    itemsize = jnp.dtype(x.dtype).itemsize

    phys_vmem = _vmem_capacity_bytes()
    # v7x-class parts: 64 MiB VMEM per TensorCore, 2 TCs; v5e/v6e: 128 MiB, 1 TC.
    two_cores = phys_vmem <= (64 << 20)
    num_cores = 2 if two_cores else 1
    if block_budget_bytes is None:
        block_budget_bytes = (4 << 20) if two_cores else (8 << 20)

    # Per-group affine params expanded to one (weight, bias) pair per (b, g)
    # slab and packed into a single tiny input (one small DMA per grid step).
    w_bg = jnp.broadcast_to(weight.reshape(1, groups), (b, groups)).reshape(bg)
    b_bg = jnp.broadcast_to(bias.reshape(1, groups), (b, groups)).reshape(bg)
    wb = jnp.stack([w_bg, b_bg], axis=-1).astype(jnp.float32).reshape(bg, 1, 1, 2)

    unroll_channels = cg < 16

    hs_full = (hw + _LANE - 1) // _LANE
    slab_bytes = cg * hs_full * _LANE * itemsize

    if slab_bytes <= block_budget_bytes:
        # ------------- fused path: whole (cg, hw) slab(s) per step ----------
        hw_pad = hs_full * _LANE
        x_r = x.reshape(bg, cg, hw)
        if hw_pad != hw:
            # TODO(synk): fold this pad (and the final slice) into the
            # pallas_call DMA (allow_input_fusion) to avoid the extra HBM
            # round trip when h*w is not a multiple of 128.
            x_r = jnp.pad(x_r, ((0, 0), (0, 0), (0, hw_pad - hw)))
        x_r = x_r.reshape(bg, cg, hs_full, _LANE)

        gfold = _pick_fold(bg, slab_bytes, block_budget_bytes, num_cores)
        block_bytes = gfold * slab_bytes
        out = pl.pallas_call(
            functools.partial(_sge_fused_kernel, hw=hw,
                              unroll_channels=unroll_channels),
            out_shape=jax.ShapeDtypeStruct((bg, cg, hs_full, _LANE), x.dtype),
            grid_spec=pltpu.PrefetchScalarGridSpec(
                num_scalar_prefetch=0,
                grid=(bg // gfold,),
                in_specs=[
                    pl.BlockSpec((gfold, 1, 1, 2), lambda i: (i, 0, 0, 0)),
                    pl.BlockSpec((gfold, cg, hs_full, _LANE),
                                 lambda i: (i, 0, 0, 0)),
                ],
                out_specs=pl.BlockSpec((gfold, cg, hs_full, _LANE),
                                       lambda i: (i, 0, 0, 0)),
            ),
            compiler_params=pltpu.CompilerParams(
                dimension_semantics=("parallel",),
                vmem_limit_bytes=_vmem_limit_bytes(phys_vmem, block_bytes)),
        )(wb, x_r)
    else:
        # ------------- hw-split path (3 phases over spatial blocks) ---------
        max_hs_blk = max(8, (block_budget_bytes // (cg * _LANE * itemsize))
                         // 8 * 8)
        hs_blk = min(max_hs_blk, ((hs_full + 7) // 8) * 8)
        hs_pad = ((hs_full + hs_blk - 1) // hs_blk) * hs_blk
        n_hw = hs_pad // hs_blk
        hw_pad = hs_pad * _LANE

        x_r = x.reshape(bg, cg, hw)
        if hw_pad != hw:
            x_r = jnp.pad(x_r, ((0, 0), (0, 0), (0, hw_pad - hw)))
        x_r = x_r.reshape(bg, cg, hs_pad, _LANE)

        block_bytes = cg * hs_blk * _LANE * itemsize
        out = pl.pallas_call(
            functools.partial(_sge_split_kernel, hw=hw,
                              unroll_channels=unroll_channels),
            out_shape=jax.ShapeDtypeStruct((bg, cg, hs_pad, _LANE), x.dtype),
            grid_spec=pltpu.PrefetchScalarGridSpec(
                num_scalar_prefetch=0,
                grid=(bg, 3, n_hw),
                in_specs=[
                    pl.BlockSpec((1, 1, 1, 2), lambda i, p, k: (i, 0, 0, 0)),
                    pl.BlockSpec((1, cg, hs_blk, _LANE),
                                 lambda i, p, k: (i, 0, k, 0)),
                ],
                # Phases 0/1 park the output window on spatial block 0 (never
                # written, never flushed); phase 2 walks and writes each block.
                out_specs=pl.BlockSpec((1, cg, hs_blk, _LANE),
                                       lambda i, p, k: (i, 0, (p // 2) * k, 0)),
                scratch_shapes=[
                    pltpu.VMEM((1, cg, 1, 1), jnp.float32),   # per-channel sums
                    pltpu.VMEM((1, 1, 1, 1), jnp.float32),    # sum(xn)
                    pltpu.VMEM((1, 1, 1, 1), jnp.float32),    # sum(xn^2)
                ],
            ),
            compiler_params=pltpu.CompilerParams(
                dimension_semantics=("parallel", "arbitrary", "arbitrary"),
                vmem_limit_bytes=_vmem_limit_bytes(phys_vmem, block_bytes)),
        )(wb, x_r)

    out = out.reshape(bg, cg, out.shape[2] * _LANE)
    if out.shape[-1] != hw:
        out = out[:, :, :hw]
    return out.reshape(b, c, h, w)


# --------------------------------------------------------------------------
# pure-JAX reference (mirror of the PyTorch forward)
# --------------------------------------------------------------------------
def _reference(x, weight, bias, groups):
    b, c, h, w = x.shape
    cg = c // groups
    xg = x.reshape(b * groups, cg, h, w)
    pooled = jnp.mean(xg, axis=(2, 3), keepdims=True)
    xn = jnp.sum(xg * pooled, axis=1, keepdims=True)          # (bg,1,h,w)
    t = xn.reshape(b * groups, -1)
    t = t - jnp.mean(t, axis=1, keepdims=True)
    std = jnp.std(t, axis=1, keepdims=True, ddof=1) + 1e-5
    t = t / std
    t = t.reshape(b, groups, h, w)
    t = t * weight + bias
    t = t.reshape(b * groups, 1, h, w)
    xg = xg * jax.nn.sigmoid(t)
    return xg.reshape(b, c, h, w)


if __name__ == "__main__":
    def run_case(b, c, h, w, groups, budget, tol):
        kx, kw, kb = jax.random.split(jax.random.PRNGKey(0), 3)
        x = jax.random.normal(kx, (b, c, h, w), dtype=jnp.float32)
        # Module __init__ uses zeros for weight/bias; use small deterministic
        # nonzero values so the gate path is actually exercised.
        weight = 0.5 * jax.random.normal(kw, (1, groups, 1, 1),
                                         dtype=jnp.float32)
        bias = 0.1 * jax.random.normal(kb, (1, groups, 1, 1),
                                       dtype=jnp.float32)
        out = jax.block_until_ready(
            spatial_group_enhance(x, weight, bias, groups,
                                  block_budget_bytes=budget))
        ref = _reference(x, weight, bias, groups)
        assert out.shape == (b, c, h, w)
        assert jnp.allclose(out, ref, atol=tol, rtol=tol), \
            f"mismatch vs reference for case {(b, c, h, w, groups, budget)}"

    # Fused single-block path (small channels-per-group -> static unroll).
    run_case(2, 4, 16, 16, 2, None, 1e-5)
    # Wide channels-per-group -> fori_loop channel path.
    run_case(1, 64, 16, 16, 2, None, 1e-5)
    # Tiny forced block budget -> exercises the 3-phase hw-split path.
    run_case(2, 4, 32, 64, 2, 8 * 1024, 1e-4)

    print("KERNEL_OK")
</pallas_src>

<mosaic_0001>
module attributes {stable_mosaic.version = 11 : i64} {
  func.func @_sge_fused_kernel(%arg0: i32, %arg1: memref<2x1x1x2xf32, #tpu.memory_space<vmem>>, %arg2: memref<2x2x2x128xf32, #tpu.memory_space<vmem>>, %arg3: memref<2x2x2x128xf32, #tpu.memory_space<vmem>>) attributes {dimension_semantics = [#tpu.dimension_semantics<parallel>], iteration_bounds = array<i64: 2>, scalar_prefetch = 0 : i64, scratch_operands = 0 : i64, tpu.core_type = #tpu.core_type<tc>, window_params = [{transform_indices = @transform_0, window_bounds = array<i64: 2, 1, 1, 2>}, {transform_indices = @transform_1, window_bounds = array<i64: 2, 2, 2, 128>}, {transform_indices = @transform_2, window_bounds = array<i64: 2, 2, 2, 128>}]} {
    %cst = arith.constant 0.000000e+00 : f32
    %0 = vector.broadcast %cst : f32 to vector<2x1x2x128xf32>
    %c0 = arith.constant 0 : index
    %c0_0 = arith.constant 0 : index
    %c0_1 = arith.constant 0 : index
    %c0_2 = arith.constant 0 : index
    %1 = vector.load %arg2[%c0, %c0_0, %c0_1, %c0_2] : memref<2x2x2x128xf32, #tpu.memory_space<vmem>>, vector<2x1x2x128xf32>
    %cst_3 = arith.constant dense<0.000000e+00> : vector<2x1x2xf32>
    %2 = vector.multi_reduction <add>, %1, %cst_3 [3] : vector<2x1x2x128xf32> to vector<2x1x2xf32>
    %3 = vector.shape_cast %2 : vector<2x1x2xf32> to vector<2x1x2x1xf32>
    %cst_4 = arith.constant dense<0.000000e+00> : vector<2x1x1xf32>
    %4 = vector.multi_reduction <add>, %3, %cst_4 [2] : vector<2x1x2x1xf32> to vector<2x1x1xf32>
    %5 = vector.shape_cast %4 : vector<2x1x1xf32> to vector<2x1x1x1xf32>
    %cst_5 = arith.constant 3.906250e-03 : f32
    %6 = vector.broadcast %cst_5 : f32 to vector<2x1x1x1xf32>
    %7 = arith.mulf %5, %6 : vector<2x1x1x1xf32>
    %8 = vector.broadcast %7 : vector<2x1x1x1xf32> to vector<2x1x2x128xf32>
    %9 = arith.mulf %1, %8 : vector<2x1x2x128xf32>
    %10 = arith.addf %0, %9 : vector<2x1x2x128xf32>
    %c0_6 = arith.constant 0 : index
    %c1 = arith.constant 1 : index
    %c0_7 = arith.constant 0 : index
    %c0_8 = arith.constant 0 : index
    %11 = vector.load %arg2[%c0_6, %c1, %c0_7, %c0_8] : memref<2x2x2x128xf32, #tpu.memory_space<vmem>>, vector<2x1x2x128xf32>
    %cst_9 = arith.constant dense<0.000000e+00> : vector<2x1x2xf32>
    %12 = vector.multi_reduction <add>, %11, %cst_9 [3] : vector<2x1x2x128xf32> to vector<2x1x2xf32>
    %13 = vector.shape_cast %12 : vector<2x1x2xf32> to vector<2x1x2x1xf32>
    %cst_10 = arith.constant dense<0.000000e+00> : vector<2x1x1xf32>
    %14 = vector.multi_reduction <add>, %13, %cst_10 [2] : vector<2x1x2x1xf32> to vector<2x1x1xf32>
    %15 = vector.shape_cast %14 : vector<2x1x1xf32> to vector<2x1x1x1xf32>
    %cst_11 = arith.constant 3.906250e-03 : f32
    %16 = vector.broadcast %cst_11 : f32 to vector<2x1x1x1xf32>
    %17 = arith.mulf %15, %16 : vector<2x1x1x1xf32>
    %18 = vector.broadcast %17 : vector<2x1x1x1xf32> to vector<2x1x2x128xf32>
    %19 = arith.mulf %11, %18 : vector<2x1x2x128xf32>
    %20 = arith.addf %10, %19 : vector<2x1x2x128xf32>
    %cst_12 = arith.constant dense<0.000000e+00> : vector<2x1x2xf32>
    %21 = vector.multi_reduction <add>, %20, %cst_12 [3] : vector<2x1x2x128xf32> to vector<2x1x2xf32>
    %22 = vector.shape_cast %21 : vector<2x1x2xf32> to vector<2x1x2x1xf32>
    %cst_13 = arith.constant dense<0.000000e+00> : vector<2x1x1xf32>
    %23 = vector.multi_reduction <add>, %22, %cst_13 [2] : vector<2x1x2x1xf32> to vector<2x1x1xf32>
    %24 = vector.shape_cast %23 : vector<2x1x1xf32> to vector<2x1x1x1xf32>
    %cst_14 = arith.constant 3.906250e-03 : f32
    %25 = vector.broadcast %cst_14 : f32 to vector<2x1x1x1xf32>
    %26 = arith.mulf %24, %25 : vector<2x1x1x1xf32>
    %27 = vector.broadcast %26 : vector<2x1x1x1xf32> to vector<2x1x2x128xf32>
    %28 = arith.subf %20, %27 : vector<2x1x2x128xf32>
    %29 = arith.mulf %28, %28 : vector<2x1x2x128xf32>
    %cst_15 = arith.constant dense<0.000000e+00> : vector<2x1x2xf32>
    %30 = vector.multi_reduction <add>, %29, %cst_15 [3] : vector<2x1x2x128xf32> to vector<2x1x2xf32>
    %31 = vector.shape_cast %30 : vector<2x1x2xf32> to vector<2x1x2x1xf32>
    %cst_16 = arith.constant dense<0.000000e+00> : vector<2x1x1xf32>
    %32 = vector.multi_reduction <add>, %31, %cst_16 [2] : vector<2x1x2x1xf32> to vector<2x1x1xf32>
    %33 = vector.shape_cast %32 : vector<2x1x1xf32> to vector<2x1x1x1xf32>
    %cst_17 = arith.constant 0.00392156886 : f32
    %34 = vector.broadcast %cst_17 : f32 to vector<2x1x1x1xf32>
    %35 = arith.mulf %33, %34 : vector<2x1x1x1xf32>
    %36 = math.sqrt %35 : vector<2x1x1x1xf32>
    %cst_18 = arith.constant 9.99999974E-6 : f32
    %37 = vector.broadcast %cst_18 : f32 to vector<2x1x1x1xf32>
    %38 = arith.addf %36, %37 : vector<2x1x1x1xf32>
    %39 = tpu.reciprocal %38 : vector<2x1x1x1xf32> -> vector<2x1x1x1xf32>
    %c0_19 = arith.constant 0 : index
    %c0_20 = arith.constant 0 : index
    %c0_21 = arith.constant 0 : index
    %c0_22 = arith.constant 0 : index
    %40 = vector.load %arg1[%c0_19, %c0_20, %c0_21, %c0_22] : memref<2x1x1x2xf32, #tpu.memory_space<vmem>>, vector<2x1x1x2xf32>
    %41 = vector.extract_strided_slice %40 {offsets = [0, 0, 0, 0], sizes = [2, 1, 1, 1], strides = [1, 1, 1, 1]} : vector<2x1x1x2xf32> to vector<2x1x1x1xf32>
    %42 = vector.extract_strided_slice %40 {offsets = [0, 0, 0, 1], sizes = [2, 1, 1, 1], strides = [1, 1, 1, 1]} : vector<2x1x1x2xf32> to vector<2x1x1x1xf32>
    %43 = arith.mulf %39, %41 : vector<2x1x1x1xf32>
    %44 = vector.broadcast %43 : vector<2x1x1x1xf32> to vector<2x1x2x128xf32>
    %45 = arith.mulf %28, %44 : vector<2x1x2x128xf32>
    %46 = vector.broadcast %42 : vector<2x1x1x1xf32> to vector<2x1x2x128xf32>
    %47 = arith.addf %45, %46 : vector<2x1x2x128xf32>
    %48 = arith.negf %47 : vector<2x1x2x128xf32>
    %49 = math.exp %48 : vector<2x1x2x128xf32>
    %cst_23 = arith.constant 1.000000e+00 : f32
    %50 = vector.broadcast %cst_23 : f32 to vector<2x1x2x128xf32>
    %51 = arith.addf %50, %49 : vector<2x1x2x128xf32>
    %52 = arith.divf %50, %51 : vector<2x1x2x128xf32>
    %c0_24 = arith.constant 0 : index
    %c0_25 = arith.constant 0 : index
    %c0_26 = arith.constant 0 : index
    %c0_27 = arith.constant 0 : index
    %53 = vector.load %arg2[%c0_24, %c0_25, %c0_26, %c0_27] : memref<2x2x2x128xf32, #tpu.memory_space<vmem>>, vector<2x1x2x128xf32>
    %54 = arith.mulf %53, %52 : vector<2x1x2x128xf32>
    %c0_28 = arith.constant 0 : index
    %c0_29 = arith.constant 0 : index
    %c0_30 = arith.constant 0 : index
    %c0_31 = arith.constant 0 : index
    %55 = vector.load %arg3[%c0_28, %c0_29, %c0_30, %c0_31] : memref<2x2x2x128xf32, #tpu.memory_space<vmem>>, vector<2x1x2x128xf32>
    tpu.vector_store %arg3[%c0_28, %c0_29, %c0_30, %c0_31], %54 {strides = array<i32>} : memref<2x2x2x128xf32, #tpu.memory_space<vmem>>, vector<2x1x2x128xf32>,
    %c0_32 = arith.constant 0 : index
    %c1_33 = arith.constant 1 : index
    %c0_34 = arith.constant 0 : index
    %c0_35 = arith.constant 0 : index
    %56 = vector.load %arg2[%c0_32, %c1_33, %c0_34, %c0_35] : memref<2x2x2x128xf32, #tpu.memory_space<vmem>>, vector<2x1x2x128xf32>
    %57 = arith.mulf %56, %52 : vector<2x1x2x128xf32>
    %c0_36 = arith.constant 0 : index
    %c1_37 = arith.constant 1 : index
    %c0_38 = arith.constant 0 : index
    %c0_39 = arith.constant 0 : index
    %58 = vector.load %arg3[%c0_36, %c1_37, %c0_38, %c0_39] : memref<2x2x2x128xf32, #tpu.memory_space<vmem>>, vector<2x1x2x128xf32>
    tpu.vector_store %arg3[%c0_36, %c1_37, %c0_38, %c0_39], %57 {strides = array<i32>} : memref<2x2x2x128xf32, #tpu.memory_space<vmem>>, vector<2x1x2x128xf32>,
    return
  }
  func.func @transform_0(%arg0: i32) -> (i32, i32, i32, i32) {
    %c0_i32 = arith.constant 0 : i32
    %c0_i32_0 = arith.constant 0 : i32
    %c0_i32_1 = arith.constant 0 : i32
    %c0_i32_2 = arith.constant 0 : i32
    return %arg0, %c0_i32, %c0_i32_0, %c0_i32_1 : i32, i32, i32, i32
  }
  func.func @transform_1(%arg0: i32) -> (i32, i32, i32, i32) {
    %c0_i32 = arith.constant 0 : i32
    %c0_i32_0 = arith.constant 0 : i32
    %c0_i32_1 = arith.constant 0 : i32
    %c0_i32_2 = arith.constant 0 : i32
    return %arg0, %c0_i32, %c0_i32_0, %c0_i32_1 : i32, i32, i32, i32
  }
  func.func @transform_2(%arg0: i32) -> (i32, i32, i32, i32) {
    %c0_i32 = arith.constant 0 : i32
    %c0_i32_0 = arith.constant 0 : i32
    %c0_i32_1 = arith.constant 0 : i32
    %c0_i32_2 = arith.constant 0 : i32
    return %arg0, %c0_i32, %c0_i32_0, %c0_i32_1 : i32, i32, i32, i32
  }
}

</mosaic_0001>

<llo_original>
// kernel: tpu_custom_call.1
$region0: #{tpu_custom_call.1}
  #allocation0 [shape = 'u32[]', space=smem, size = 0x4, offset = 0x4, fixed_abs, tag = 'smem constant byte address 0x4 - core index']
  #allocation1 [shape = 'u32[144,128]{1,0:T(1,128)}', space=vmem, size = 0x12000, scoped, tag = 'internal scratch']
  %s0 = inlined_call_operand.vmem [shape: f32[4,1,1,2], index: 0, kind: input, shape index: {}]
  %s1 = inlined_call_operand.hbm [shape: f32[4,2,2,128], index: 1, kind: input, shape index: {}]
  %s2 = inlined_call_operand.hbm [shape: f32[4,2,2,128], index: 2, kind: output, shape index: {}]
  %s3 = sld [smem:[#allocation0]]
  $region45: #{tpu_custom_call.1} parent=0
    _
  %s5 = ssub.s32 1, %s3
  %s6 = scalar_select 0, %s5, %s3
  $region1: #{tpu_custom_call.1} parent=0
    #allocation2 [shape = 'u8[8192]{0}', space=vmem, size = 0x2000, scoped, tag = 'input window, operand 1']
    #allocation3 [shape = 's32[2]{0}', space=sflag, size = 0x8, scoped, tag = 'scoped memory for tpu_custom_call.1']
    #allocation4 [shape = 's32[2]{0}', space=sflag, size = 0x8, scoped, tag = 'scoped memory for tpu_custom_call.1']
    #allocation5 [shape = 'u8[8192]{0}', space=vmem, size = 0x2000, scoped, tag = 'output window, operand 0']
    %7 = vsyncpa [#allocation3], 0
    %s8 = scalar_lea.sflag [#allocation3], 1
    %9 = vsyncpa %s8, 0
    %10 = vsyncpa [#allocation4], 0
    %s11 = scalar_lea.sflag [#allocation4], 1
    %12 = vsyncpa %s11, 0
    loop: start=0, step=1, limit=4
    $region2: #{tpu_custom_call.1} parent=1 // loop_pre_header
      _
    $region3: #{tpu_custom_call.1} parent=1 // loop_header
      %s14 = sphi 0, %s18
      %p15 = scmp.ge.s32.totalorder %s14, 4
      %s24 = sphi 0, %s26
      %s27 = sphi 0, %s24
      %s28 = sphi 0, %s27
      %s44 = sphi 0, %s28
      %s50 = sphi 0, %s52
      %s53 = sphi 0, %s50
      %s54 = sphi 0, %s53
      %s70 = sphi 0, %s54
      %s76 = sphi 0, %s78
      %s79 = sphi 0, %s76
      %s80 = sphi 0, %s79
      %s96 = sphi 0, %s80
    $region4: #{tpu_custom_call.1} parent=1 // loop_header_branch
      %17 = sbr.rel (%p15) target = $region8
    $region5: #{tpu_custom_call.1} parent=1 // loop_body
      %s19 = ssub.s32 %s14, 1
      %s20 = ssub.s32 %s14, 2
      %s21 = sadd.s32 %s14, 1
      %s22 = ssub.s32 %s14, %s21
      %p23 = scmp.eq.s32.totalorder %s22, 0
      %s25 = sadd.s32 %s24, 1
      %s26 = scalar_select %p23, %s24, %s25
      %p29 = pneg %p23
      %p30 = scmp.eq.s32.totalorder %s14, 1
      %p31 = por %p29, %p30
      %p32 = scmp.ne.s32.totalorder %s24, %s27
      %p33 = scmp.eq.s32.totalorder %s14, 0
      %p34 = por %p32, %p33
      %p35 = scmp.ne.s32.totalorder %s24, %s27
      %p36 = scmp.eq.s32.totalorder %s19, 1
      %p37 = por %p35, %p36
      %p38 = scmp.ne.s32.totalorder %s27, %s28
      %p39 = scmp.eq.s32.totalorder %s19, 0
      %p40 = por %p38, %p39
      %p41 = scmp.ne.s32.totalorder %s27, %s28
      %p42 = scmp.eq.s32.totalorder %s20, 1
      %p43 = por %p41, %p42
      %p45 = scmp.ne.s32.totalorder %s28, %s44
      %p46 = scmp.eq.s32.totalorder %s20, 0
      %p47 = por %p45, %p46
      %s48 = ssub.s32 %s14, %s21
      %p49 = scmp.eq.s32.totalorder %s48, 0
      %s51 = sadd.s32 %s50, 1
      %s52 = scalar_select %p49, %s50, %s51
      %p55 = pneg %p49
      %p56 = scmp.eq.s32.totalorder %s14, 1
      %p57 = por %p55, %p56
      %p58 = scmp.ne.s32.totalorder %s50, %s53
      %p59 = scmp.eq.s32.totalorder %s14, 0
      %p60 = por %p58, %p59
      %p61 = scmp.ne.s32.totalorder %s50, %s53
      %p62 = scmp.eq.s32.totalorder %s19, 1
      %p63 = por %p61, %p62
      %p64 = scmp.ne.s32.totalorder %s53, %s54
      %p65 = scmp.eq.s32.totalorder %s19, 0
      %p66 = por %p64, %p65
      %p67 = scmp.ne.s32.totalorder %s53, %s54
      %p68 = scmp.eq.s32.totalorder %s20, 1
      %p69 = por %p67, %p68
      %p71 = scmp.ne.s32.totalorder %s54, %s70
      %p72 = scmp.eq.s32.totalorder %s20, 0
      %p73 = por %p71, %p72
      %s74 = ssub.s32 %s14, %s21
      %p75 = scmp.eq.s32.totalorder %s74, 0
      %s77 = sadd.s32 %s76, 1
      %s78 = scalar_select %p75, %s76, %s77
      %p81 = pneg %p75
      %p82 = scmp.eq.s32.totalorder %s14, 1
      %p83 = por %p81, %p82
      %p84 = scmp.ne.s32.totalorder %s76, %s79
      %p85 = scmp.eq.s32.totalorder %s14, 0
      %p86 = por %p84, %p85
      %p87 = scmp.ne.s32.totalorder %s76, %s79
      %p88 = scmp.eq.s32.totalorder %s19, 1
      %p89 = por %p87, %p88
      %p90 = scmp.ne.s32.totalorder %s79, %s80
      %p91 = scmp.eq.s32.totalorder %s19, 0
      %p92 = por %p90, %p91
      %p93 = scmp.ne.s32.totalorder %s79, %s80
      %p94 = scmp.eq.s32.totalorder %s20, 1
      %p95 = por %p93, %p94
      %p97 = scmp.ne.s32.totalorder %s80, %s96
      %p98 = scmp.eq.s32.totalorder %s20, 0
      %p99 = por %p97, %p98
      %p100 = scmp.le.s32.totalorder 1, %s14
      %p101 = scmp.lt.s32.totalorder %s14, 3
      %p102 = pnand %p100, %p101
      %p103 = pneg %p102
      // Predicated region
      $region9: #{tpu_custom_call.1} parent=5 // pred_check
        _
      $region10: #{tpu_custom_call.1} parent=5 // pred_check_branch
        %105 = sbr.rel (%p102) target = $region12
      $region11: #{tpu_custom_call.1} parent=5 // pred_region
        %s106 = ssub.s32 %s14, 1
      $region12: #{tpu_custom_call.1} parent=5 // pred_fallthru
        _
      %p107 = scmp.lt.s32.totalorder %s14, 2
      // Predicated region
      $region13: #{tpu_custom_call.1} parent=5 // pred_check
        %p108 = pneg %p107
      $region14: #{tpu_custom_call.1} parent=5 // pred_check_branch
        %110 = sbr.rel (%p108) target = $region16
      $region15: #{tpu_custom_call.1} parent=5 // pred_region
        // Predicated region
        $region17: #{tpu_custom_call.1} parent=15 // pred_check
          %p111 = pneg %p34
        $region18: #{tpu_custom_call.1} parent=15 // pred_check_branch
          %113 = sbr.rel (%p111) target = $region20
        $region19: #{tpu_custom_call.1} parent=15 // pred_region
          %s114 = smul.u32 2, %s14
          %p115 = scmp.lt.s32.totalorder %s114, 3
          %s116 = scalar_select %p115, %s114, 3
          %s117 = scalar_lea.vmem %s0, %s116
          %s118 = smul.u32 2, %s14
        $region20: #{tpu_custom_call.1} parent=15 // pred_fallthru
          _
        // Predicated region
        $region21: #{tpu_custom_call.1} parent=15 // pred_check
          %p119 = pneg %p60
        $region22: #{tpu_custom_call.1} parent=15 // pred_check_branch
          %121 = sbr.rel (%p119) target = $region24
        $region23: #{tpu_custom_call.1} parent=15 // pred_region
          %s122 = sand.u32 %s50, 1
          %s123 = scalar_lea.sflag [#allocation3], %s122
          %s124 = sand.u32 %s50, 1
          %s125 = smul.addr %s124, 8
          %s126 = scalar_lea.vmem [#allocation2], %s125
          %s127 = smul.u32 2, %s14
          %s129 = ssub.s32 128, 128
          %130 = vsyncadd %s123, %s129
          %s131 = smul.addr %s127, 2
          %s132 = smul.addr %s131, 32
          %s133 = scalar_lea.hbm %s1, %s132
          %s134 = sshll.u32 %s126, 4
          %s135 = int_to_ptr.vmem [resolvable:$true] %s134
          %140 = dma.hbm_to_vmem [thread:$0]  %s133, 128, %s135, %s123, 32, 32, 2
        $region24: #{tpu_custom_call.1} parent=15 // pred_fallthru
          _
      $region16: #{tpu_custom_call.1} parent=5 // pred_fallthru
        _
      %p141 = scmp.le.s32.totalorder 1, %s14
      %p142 = scmp.lt.s32.totalorder %s14, 3
      %p143 = pnand %p141, %p142
      %p144 = pneg %p143
      // Predicated region
      $region25: #{tpu_custom_call.1} parent=5 // pred_check
        _
      $region26: #{tpu_custom_call.1} parent=5 // pred_check_branch
        %146 = sbr.rel (%p143) target = $region28
      $region27: #{tpu_custom_call.1} parent=5 // pred_region
        %s147 = ssub.s32 %s14, 1
        %s148 = sand.u32 %s53, 1
        %s149 = scalar_lea.sflag [#allocation3], %s148
        %s150 = sand.u32 %s53, 1
        %s151 = smul.addr %s150, 8
        %s152 = scalar_lea.vmem [#allocation2], %s151
        // Predicated region
        $region29: #{tpu_custom_call.1} parent=27 // pred_check
          %p153 = pneg %p66
        $region30: #{tpu_custom_call.1} parent=27 // pred_check_branch
          %155 = sbr.rel (%p153) target = $region32
        $region31: #{tpu_custom_call.1} parent=27 // pred_region
          %156 = dma.done %s149, 128
        $region32: #{tpu_custom_call.1} parent=27 // pred_fallthru
          _
        %s157 = smul.u32 2, %s19
        %p158 = scmp.lt.s32.totalorder %s157, 3
        %s159 = scalar_select %p158, %s157, 3
        %s160 = scalar_lea.vmem %s0, %s159
        %p161 = pneg %p40
        %p162 = pneg %p37
        %s163 = sand.u32 %s53, 1
        %s164 = scalar_lea.sflag [#allocation3], %s163
        %s165 = sand.u32 %s53, 1
        %s166 = smul.addr %s165, 8
        %s167 = scalar_lea.vmem [#allocation2], %s166
        %p168 = pneg %p66
        %p169 = pneg %p63
        %p170 = pneg %p92
        %p171 = pneg %p89
        %s172 = sand.u32 %s79, 1
        %s173 = scalar_lea.sflag [#allocation4], %s172
        %s174 = sand.u32 %s79, 1
        %s175 = smul.addr %s174, 8
        %s176 = scalar_lea.vmem [#allocation5], %s175
        %s177 = smul.u32 2, %s19
        %p178 = scmp.lt.s32.totalorder %s177, 3
        %s179 = scalar_select %p178, %s177, 3
        %s180 = scalar_lea.vmem %s0, %s179
        %s181 = smul.u32 2, %s19
        %s182 = smul.u32 2, %s19
        %s183 = smul.u32 2, %s19
        %v184 = vld [vmem:[%s152] sm:$0x3]
        %v185 = vld [vmem:[%s152 + $0x4] sm:$0x3]
        %vm186 = vcmask 1041408
        %v187 = vsel %vm186, %v184, 0.0
        %188 = vadd.xlane.f32.xlu0 %v187
        %v189 = vpop.xlane.xlu0 %188
        %v190 = vsel %vm186, %v185, 0.0
        %191 = vadd.xlane.f32.xlu0 %v190
        %v192 = vpop.xlane.xlu0 %191
        %v193 = vsel %vm186, %v189, 0.0
        %v194 = vrot.slane %v193, 4
        %v195 = vadd.f32 %v193, %v194
        %v196 = vrot.slane %v195, 2
        %v197 = vadd.f32 %v195, %v196
        %v198 = vrot.slane %v197, 1
        %v199 = vadd.f32 %v197, %v198
        %v200 = vsel %vm186, %v192, 0.0
        %v201 = vrot.slane %v200, 4
        %v202 = vadd.f32 %v200, %v201
        %v203 = vrot.slane %v202, 2
        %v204 = vadd.f32 %v202, %v203
        %v205 = vrot.slane %v204, 1
        %v206 = vadd.f32 %v204, %v205
        %v207 = vmul.f32 %v199, 0.00390625
        %v208 = vmul.f32 %v206, 0.00390625
        %v209 = vmul.f32 %v184, %v207
        %v210 = vmul.f32 %v185, %v208
        %v211 = vadd.f32 %v209, 0.0
        %v212 = vadd.f32 %v210, 0.0
        %s213 = scalar_lea.vmem %s152, 2 [#allocation2]
        %v214 = vld [vmem:[%s213] sm:$0x3]
        %v215 = vld [vmem:[%s213 + $0x4] sm:$0x3]
        %v216 = vsel %vm186, %v214, 0.0
        %217 = vadd.xlane.f32.xlu0 %v216
        %v218 = vpop.xlane.xlu0 %217
        %v219 = vsel %vm186, %v215, 0.0
        %220 = vadd.xlane.f32.xlu0 %v219
        %v221 = vpop.xlane.xlu0 %220
        %v222 = vsel %vm186, %v218, 0.0
        %v223 = vrot.slane %v222, 4
        %v224 = vadd.f32 %v222, %v223
        %v225 = vrot.slane %v224, 2
        %v226 = vadd.f32 %v224, %v225
        %v227 = vrot.slane %v226, 1
        %v228 = vadd.f32 %v226, %v227
        %v229 = vsel %vm186, %v221, 0.0
        %v230 = vrot.slane %v229, 4
        %v231 = vadd.f32 %v229, %v230
        %v232 = vrot.slane %v231, 2
        %v233 = vadd.f32 %v231, %v232
        %v234 = vrot.slane %v233, 1
        %v235 = vadd.f32 %v233, %v234
        %v236 = vmul.f32 %v228, 0.00390625
        %v237 = vmul.f32 %v235, 0.00390625
        %v238 = vmul.f32 %v214, %v236
        %v239 = vmul.f32 %v215, %v237
        %v240 = vadd.f32 %v211, %v238
        %v241 = vadd.f32 %v212, %v239
        %v242 = vsel %vm186, %v240, 0.0
        %243 = vadd.xlane.f32.xlu0 %v242
        %v244 = vpop.xlane.xlu0 %243
        %v245 = vsel %vm186, %v241, 0.0
        %246 = vadd.xlane.f32.xlu0 %v245
        %v247 = vpop.xlane.xlu0 %246
        %v248 = vsel %vm186, %v244, 0.0
        %v249 = vrot.slane %v248, 4
        %v250 = vadd.f32 %v248, %v249
        %v251 = vrot.slane %v250, 2
        %v252 = vadd.f32 %v250, %v251
        %v253 = vrot.slane %v252, 1
        %v254 = vadd.f32 %v252, %v253
        %v255 = vsel %vm186, %v247, 0.0
        %v256 = vrot.slane %v255, 4
        %v257 = vadd.f32 %v255, %v256
        %v258 = vrot.slane %v257, 2
        %v259 = vadd.f32 %v257, %v258
        %v260 = vrot.slane %v259, 1
        %v261 = vadd.f32 %v259, %v260
        %v262 = vmul.f32 %v254, 0.00390625
        %v263 = vmul.f32 %v261, 0.00390625
        %v264 = vsub.f32 %v240, %v262
        %v265 = vsub.f32 %v241, %v263
        %v266 = vmul.f32 %v264, %v264
        %v267 = vmul.f32 %v265, %v265
        %v268 = vsel %vm186, %v266, 0.0
        %269 = vadd.xlane.f32.xlu0 %v268
        %v270 = vpop.xlane.xlu0 %269
        %v271 = vsel %vm186, %v267, 0.0
        %272 = vadd.xlane.f32.xlu0 %v271
        %v273 = vpop.xlane.xlu0 %272
        %v274 = vsel %vm186, %v270, 0.0
        %v275 = vrot.slane %v274, 4
        %v276 = vadd.f32 %v274, %v275
        %v277 = vrot.slane %v276, 2
        %v278 = vadd.f32 %v276, %v277
        %v279 = vrot.slane %v278, 1
        %v280 = vadd.f32 %v278, %v279
        %v281 = vsel %vm186, %v273, 0.0
        %v282 = vrot.slane %v281, 4
        %v283 = vadd.f32 %v281, %v282
        %v284 = vrot.slane %v283, 2
        %v285 = vadd.f32 %v283, %v284
        %v286 = vrot.slane %v285, 1
        %v287 = vadd.f32 %v285, %v286
        %v288 = vmul.f32 %v280, 0.003921569
        %v289 = vmul.f32 %v287, 0.003921569
        %v290 = vrsqrt.pop %v288
        %v291 = vmul.f32 %v288, %v290
        %vm292 = vcmp.eq.f32.partialorder %v288, inf
        %v293 = vsel %vm292, %v288, %v291
        %vm294 = vcmp.eq.f32.partialorder %v288, 0.0
        %v295 = vand.u32 %v288, 2147483648
        %v296 = vsel %vm294, %v295, %v293
        %v297 = vrsqrt.pop %v289
        %v298 = vmul.f32 %v289, %v297
        %vm299 = vcmp.eq.f32.partialorder %v289, inf
        %v300 = vsel %vm299, %v289, %v298
        %vm301 = vcmp.eq.f32.partialorder %v289, 0.0
        %v302 = vand.u32 %v289, 2147483648
        %v303 = vsel %vm301, %v302, %v300
        %v304 = vadd.f32 %v296, 1e-05
        %v305 = vadd.f32 %v303, 1e-05
        %v306 = vrcp.pop %v304
        %v307 = vrcp.pop %v305
        %v308 = vld [vmem:[%s180] sm:$0x1]
        %v309 = vld [vmem:[%s180 + $0x1] sm:$0x1]
        %v310 = vmul.f32 %v306, %v308
        %v311 = vmul.f32 %v307, %v309
        %v314 = vlaneseq
        %v315 = vshrl.u32 %v314, 7
        %v316 = vsub.s32 0, %v315
        %v317 = vrot.slane %v310, %v316
        %v318 = vlaneseq
        %v319 = vshrl.u32 %v318, 7
        %v320 = vsub.s32 0, %v319
        %v321 = vrot.slane %v311, %v320
        %322 = vset.pattern.permute.xlu0 0
        %323 = vperm.xlu0 %322, %v317
        %v324 = vpop.permute.xlu0 %323
        %326 = vset.pattern.permute.xlu0 0
        %327 = vperm.xlu0 %326, %v321
        %v328 = vpop.permute.xlu0 %327
        %v330 = vmul.f32 %v264, %v324
        %v331 = vmul.f32 %v265, %v328
        %v334 = vlaneseq
        %v335 = vshrl.u32 %v334, 7
        %v336 = vsub.s32 0, %v335
        %v337 = vrot.slane %v308, %v336
        %v338 = vlaneseq
        %v339 = vshrl.u32 %v338, 7
        %v340 = vsub.s32 0, %v339
        %v341 = vrot.slane %v309, %v340
        %342 = vset.pattern.permute.xlu0 1
        %343 = vperm.xlu0 %342, %v337
        %v344 = vpop.permute.xlu0 %343
        %346 = vset.pattern.permute.xlu0 1
        %347 = vperm.xlu0 %346, %v341
        %v348 = vpop.permute.xlu0 %347
        %v350 = vadd.f32 %v330, %v344
        %v351 = vadd.f32 %v331, %v348
        %v352 = vxor.u32 %v350, 2147483648
        %v353 = vxor.u32 %v351, 2147483648
        %v354 = vmul.f32 %v352, 1.442695
        %v355 = vpow.pop %v354
        %v356 = vmul.f32 %v353, 1.442695
        %v357 = vpow.pop %v356
        %v358 = vadd.f32 %v355, 1.0
        %v359 = vadd.f32 %v357, 1.0
        %v360 = vrcp.pop %v358
        %v361 = vmul.f32 1.0, %v360
        %v362 = vrcp.pop %v359
        %v363 = vmul.f32 1.0, %v362
        %v364 = vmul.f32 %v184, %v361
        %v365 = vmul.f32 %v185, %v363
        %366 = vst [vmem:[%s176] sm:$0x3] %v364
        %367 = vst [vmem:[%s176 + $0x4] sm:$0x3] %v365
        %v368 = vld [vmem:[%s213] sm:$0x3]
        %v369 = vld [vmem:[%s213 + $0x4] sm:$0x3]
        %v370 = vmul.f32 %v368, %v361
        %v371 = vmul.f32 %v369, %v363
        %s372 = scalar_lea.vmem %s176, 2 [#allocation5]
        %373 = vst [vmem:[%s372] sm:$0x3] %v370
        %374 = vst [vmem:[%s372 + $0x4] sm:$0x3] %v371
        %s375 = sand.u32 %s79, 1
        %s376 = scalar_lea.sflag [#allocation4], %s375
        %s377 = sand.u32 %s79, 1
        %s378 = smul.addr %s377, 8
        %s379 = scalar_lea.vmem [#allocation5], %s378
        // Predicated region
        $region33: #{tpu_custom_call.1} parent=27 // pred_check
          %p380 = pneg %p89
        $region34: #{tpu_custom_call.1} parent=27 // pred_check_branch
          %382 = sbr.rel (%p380) target = $region36
        $region35: #{tpu_custom_call.1} parent=27 // pred_region
          %s383 = smul.u32 2, %s19
          %s385 = ssub.s32 128, 128
          %386 = vsyncadd %s376, %s385
          %s387 = smul.addr %s383, 2
          %s388 = smul.addr %s387, 32
          %s389 = scalar_lea.hbm %s2, %s388
          %s390 = sshll.u32 %s379, 4
          %s391 = int_to_ptr.vmem [resolvable:$true] %s390
          %396 = dma.vmem_to_hbm [thread:$0]  %s391, 128, %s389, %s376, 32, 32, 2
        $region36: #{tpu_custom_call.1} parent=27 // pred_fallthru
          _
      $region28: #{tpu_custom_call.1} parent=5 // pred_fallthru
        _
      %p397 = scmp.le.s32.totalorder 2, %s14
      // Predicated region
      $region37: #{tpu_custom_call.1} parent=5 // pred_check
        %p398 = pneg %p397
      $region38: #{tpu_custom_call.1} parent=5 // pred_check_branch
        %400 = sbr.rel (%p398) target = $region40
      $region39: #{tpu_custom_call.1} parent=5 // pred_region
        %s401 = ssub.s32 %s14, 2
        // Predicated region
        $region41: #{tpu_custom_call.1} parent=39 // pred_check
          %p402 = pneg %p95
        $region42: #{tpu_custom_call.1} parent=39 // pred_check_branch
          %404 = sbr.rel (%p402) target = $region44
        $region43: #{tpu_custom_call.1} parent=39 // pred_region
          %s405 = sand.u32 %s80, 1
          %s406 = scalar_lea.sflag [#allocation4], %s405
          %s407 = sand.u32 %s80, 1
          %s408 = smul.addr %s407, 8
          %s409 = scalar_lea.vmem [#allocation5], %s408
          %410 = dma.done %s406, 128
        $region44: #{tpu_custom_call.1} parent=39 // pred_fallthru
          _
      $region40: #{tpu_custom_call.1} parent=5 // pred_fallthru
        _
    $region6: #{tpu_custom_call.1} parent=1 // loop_footer
      %s18 = sadd.s32 1, %s14
    $region7: #{tpu_custom_call.1} parent=1 // loop_footer_branch
      %13 = sbr.rel target = $region3
    $region8: #{tpu_custom_call.1} parent=1 // loop_exit
      _
    %411 = vsyncpa [#allocation3], 1
    %s412 = scalar_lea.sflag [#allocation3], 1
    %413 = vsyncpa %s412, 1
    %414 = vsyncpa [#allocation4], 1
    %s415 = scalar_lea.sflag [#allocation4], 1
    %416 = vsyncpa %s415, 1

</llo_original>
